<compile_context>
chip_gen: v7x
topology: tpu7x:2x2x1
jax: 0.10.0
libtpu: 0.0.40
codegen_flags: <defaults>
</compile_context>

<pallas_src>
import jax
import jax.numpy as jnp
from jax.experimental import pallas as pl
from jax.experimental.pallas import tpu as pltpu

KSIZE = 3  # both Conv1d layers use kernel_size=3


# ----------------------------- Pallas kernels ------------------------------ #

def conv_block_kernel(m_ref, w0_ref, b0_ref, w1_ref, b1_ref, out_ref):
    """Fused c1(relu(c0(M))) for a block of BT batch rows.

    m_ref:   (BT, L, C_in)        channels-last input block
    w0_ref:  (K*C_in, C_mid)      im2col-flattened c0 weight
    b0_ref:  (1, C_mid)           f32 bias
    w1_ref:  (K*C_mid, C_out)     im2col-flattened c1 weight
    b1_ref:  (1, C_out)           f32 bias
    out_ref: (BT, L2, C_out)      c1 output (no activation, matching PyTorch)
    """
    BT, L, _ = m_ref.shape
    L1 = L - (KSIZE - 1)            # length after c0 (VALID conv)
    L2 = L1 - (KSIZE - 1)           # length after c1

    w0 = w0_ref[...]                # load weights once (reused for all BT rows)
    w1 = w1_ref[...]
    b0 = b0_ref[0]
    b1 = b1_ref[0]
    cdt = w0.dtype

    # Static unroll over the batch tile; each row does two big im2col matmuls.
    for i in range(BT):
        m = m_ref[i]                                          # (L, C_in)
        # c0: im2col -> one (L1, K*C_in) @ (K*C_in, C_mid) MXU matmul
        x = jnp.concatenate([m[k:k + L1, :] for k in range(KSIZE)], axis=1)
        h = jnp.dot(x, w0, preferred_element_type=jnp.float32)
        h = jnp.maximum(h + b0, 0.0).astype(cdt)              # ReLU after c0
        # c1: im2col -> one (L2, K*C_mid) @ (K*C_mid, C_out) MXU matmul
        y = jnp.concatenate([h[k:k + L2, :] for k in range(KSIZE)], axis=1)
        c = jnp.dot(y, w1, preferred_element_type=jnp.float32) + b1
        out_ref[i] = c.astype(out_ref.dtype)


def mlp_kernel(e_ref, c_ref, w0e_ref, w0c_ref, b0_ref, w1_ref, b1_ref,
               w2_ref, b2_ref, o_ref, acc_ref):
    """l2(relu(l1(relu(E@W0e + Cflat@W0c + b0)))) with the C-part K-tiled.

    Grid = (batch_blocks, k_blocks); k is the reduction over the conv features.
    e_ref:   (BTm, E_dim)     c_ref: (BTm, TK)      acc_ref: (BTm, INTERM) f32
    w0e_ref: (E_dim, INTERM)  w0c_ref: (TK, INTERM) (rows in l*C_out+c order)
    w1_ref:  (INTERM, INTERM) w2_ref: (INTERM, 1)   biases: (1, ...) f32
    o_ref:   (BTm, 1)
    """
    k = pl.program_id(1)

    @pl.when(k == 0)
    def _():
        acc_ref[...] = jnp.zeros_like(acc_ref)

    acc_ref[...] += jnp.dot(c_ref[...], w0c_ref[...],
                            preferred_element_type=jnp.float32)

    @pl.when(k == pl.num_programs(1) - 1)
    def _():
        h = acc_ref[...] + jnp.dot(e_ref[...], w0e_ref[...],
                                   preferred_element_type=jnp.float32)
        h = jnp.maximum(h + b0_ref[0], 0.0).astype(w1_ref.dtype)
        h = jnp.dot(h, w1_ref[...], preferred_element_type=jnp.float32)
        h = jnp.maximum(h + b1_ref[0], 0.0).astype(w2_ref.dtype)
        out = jnp.dot(h, w2_ref[...], preferred_element_type=jnp.float32) + b2_ref[0]
        o_ref[...] = out.astype(o_ref.dtype)


# ------------------------------ Tile pickers -------------------------------- #

def _pick_batch_tile(b, target):
    """Largest divisor of b that is <= target and a multiple of 8, else b."""
    if b <= target:
        return b
    for t in range(min(target, b), 0, -1):
        if b % t == 0 and t % 8 == 0:
            return t
    return b


def _pick_k_tile(ck, target):
    """Largest divisor of ck that is <= target and a multiple of 128, else ck."""
    if ck <= target:
        return ck
    for t in range(target - target % 128, 0, -128):
        if ck % t == 0:
            return t
    return ck


# ------------------------------- Wrapper ------------------------------------ #

def global_discriminator_forward(E, M, params, *, compute_dtype=jnp.float32,
                                 conv_batch_tile=8, mlp_batch_tile=256,
                                 mlp_k_tile=2048):
    """E: (B, E_dim), M: (B, C_in, L)  (PyTorch NCW layout)."""
    (w0, b0, w1, b1, wl0, bl0, wl1, bl1, wl2, bl2) = params
    B, C_in, L = M.shape
    K, _, C_mid = w0.shape
    C_out = w1.shape[2]
    L1 = L - (K - 1)
    L2 = L1 - (K - 1)
    CK = C_out * L2
    E_dim = E.shape[1]
    INTERM = wl0.shape[1]
    cdt = compute_dtype

    # ---- conv operands: channels-last activations, im2col-flattened weights
    M_lc = jnp.transpose(M, (0, 2, 1)).astype(cdt)            # (B, L, C_in)
    w0_f = w0.reshape(K * C_in, C_mid).astype(cdt)            # rows = k*C_in + c
    w1_f = w1.reshape(K * C_mid, C_out).astype(cdt)
    b0_f = b0.astype(jnp.float32)
    b1_f = b1.astype(jnp.float32)

    BT = _pick_batch_tile(B, conv_batch_tile)
    conv_out = pl.pallas_call(
        conv_block_kernel,
        out_shape=jax.ShapeDtypeStruct((B, L2, C_out), cdt),
        grid_spec=pltpu.PrefetchScalarGridSpec(
            num_scalar_prefetch=0,
            grid=(B // BT,),
            in_specs=[
                pl.BlockSpec((BT, L, C_in), lambda b: (b, 0, 0)),
                pl.BlockSpec((K * C_in, C_mid), lambda b: (0, 0)),
                pl.BlockSpec((1, C_mid), lambda b: (0, 0)),
                pl.BlockSpec((K * C_mid, C_out), lambda b: (0, 0)),
                pl.BlockSpec((1, C_out), lambda b: (0, 0)),
            ],
            out_specs=pl.BlockSpec((BT, L2, C_out), lambda b: (b, 0, 0)),
        ),
        compiler_params=pltpu.CompilerParams(
            dimension_semantics=("parallel",),
            vmem_limit_bytes=32 * 1024 * 1024),
    )(M_lc, w0_f, b0_f, w1_f, b1_f)

    # Free minor-dim flatten (no transpose, no extra HBM round trip): row index
    # of the flattened features is l*C_out + c.
    C_flat = conv_out.reshape(B, CK)

    # ---- l0 weight split + row permutation.
    # PyTorch: cat((E, C.view(B,-1))) -> E rows first, then C rows in
    # channel-major (c*L2 + l) order.  Permute the C rows into our (l*C_out + c)
    # order once, offline, so the kernels never transpose activations.
    wl0_E = wl0[:E_dim].astype(cdt)                                       # (E_dim, INTERM)
    wl0_C = jnp.transpose(wl0[E_dim:].reshape(C_out, L2, INTERM),
                          (1, 0, 2)).reshape(CK, INTERM).astype(cdt)      # (CK, INTERM)

    BTm = _pick_batch_tile(B, mlp_batch_tile)
    TK = _pick_k_tile(CK, mlp_k_tile)

    out = pl.pallas_call(
        mlp_kernel,
        out_shape=jax.ShapeDtypeStruct((B, 1), jnp.float32),
        grid_spec=pltpu.PrefetchScalarGridSpec(
            num_scalar_prefetch=0,
            grid=(B // BTm, CK // TK),
            in_specs=[
                pl.BlockSpec((BTm, E_dim), lambda b, k: (b, 0)),
                pl.BlockSpec((BTm, TK), lambda b, k: (b, k)),
                pl.BlockSpec((E_dim, INTERM), lambda b, k: (0, 0)),
                pl.BlockSpec((TK, INTERM), lambda b, k: (k, 0)),
                pl.BlockSpec((1, INTERM), lambda b, k: (0, 0)),
                pl.BlockSpec((INTERM, INTERM), lambda b, k: (0, 0)),
                pl.BlockSpec((1, INTERM), lambda b, k: (0, 0)),
                pl.BlockSpec((INTERM, 1), lambda b, k: (0, 0)),
                pl.BlockSpec((1, 1), lambda b, k: (0, 0)),
            ],
            out_specs=pl.BlockSpec((BTm, 1), lambda b, k: (b, 0)),
            scratch_shapes=[pltpu.VMEM((BTm, INTERM), jnp.float32)],
        ),
        compiler_params=pltpu.CompilerParams(
            dimension_semantics=("parallel", "arbitrary"),
            vmem_limit_bytes=32 * 1024 * 1024),
    )(E.astype(cdt), C_flat, wl0_E, wl0_C,
      bl0.astype(jnp.float32), wl1.astype(cdt), bl1.astype(jnp.float32),
      wl2.astype(cdt), bl2.astype(jnp.float32))
    return out


# --------------------------- Pure-JAX reference ----------------------------- #

def reference_forward(E, M, params):
    (w0, b0, w1, b1, wl0, bl0, wl1, bl1, wl2, bl2) = params
    rhs0 = jnp.transpose(w0, (2, 1, 0))   # (C_mid, C_in, K)
    rhs1 = jnp.transpose(w1, (2, 1, 0))   # (C_out, C_mid, K)
    C = jax.lax.conv_general_dilated(M, rhs0, (1,), 'VALID',
                                     dimension_numbers=('NCH', 'OIH', 'NCH'))
    C = jax.nn.relu(C + b0[0][None, :, None])
    C = jax.lax.conv_general_dilated(C, rhs1, (1,), 'VALID',
                                     dimension_numbers=('NCH', 'OIH', 'NCH'))
    C = C + b1[0][None, :, None]
    C = C.reshape(E.shape[0], -1)
    out = jnp.concatenate([E, C], axis=1)
    out = jax.nn.relu(out @ wl0 + bl0[0])
    out = jax.nn.relu(out @ wl1 + bl1[0])
    out = out @ wl2 + bl2[0]
    return out


# --------------------------------- Main -------------------------------------- #

if __name__ == "__main__":
    # Small shapes consistent with the module's structure
    # (module scale: C_in=768, C_mid=256, C_out=64, L=150, E_dim=256, interm=512)
    B, C_in, C_mid, C_out = 2, 32, 16, 8
    L, E_dim, INTERM = 12, 16, 32
    L2 = L - 2 * (KSIZE - 1)
    in_feature = C_out * L2 + E_dim      # analog of 64*(150-2*2) + 256

    key = jax.random.PRNGKey(0)
    ks = jax.random.split(key, 12)
    scale = 0.05
    params = (
        scale * jax.random.normal(ks[0], (KSIZE, C_in, C_mid), jnp.float32),   # c0.w
        scale * jax.random.normal(ks[1], (1, C_mid), jnp.float32),             # c0.b
        scale * jax.random.normal(ks[2], (KSIZE, C_mid, C_out), jnp.float32),  # c1.w
        scale * jax.random.normal(ks[3], (1, C_out), jnp.float32),             # c1.b
        scale * jax.random.normal(ks[4], (in_feature, INTERM), jnp.float32),   # l0.w
        scale * jax.random.normal(ks[5], (1, INTERM), jnp.float32),            # l0.b
        scale * jax.random.normal(ks[6], (INTERM, INTERM), jnp.float32),       # l1.w
        scale * jax.random.normal(ks[7], (1, INTERM), jnp.float32),            # l1.b
        scale * jax.random.normal(ks[8], (INTERM, 1), jnp.float32),            # l2.w
        scale * jax.random.normal(ks[9], (1, 1), jnp.float32),                 # l2.b
    )

    E = jax.random.normal(ks[10], (B, E_dim), jnp.float32)
    M = jax.random.normal(ks[11], (B, C_in, L), jnp.float32)

    fwd_f32 = jax.jit(lambda e, m, p: global_discriminator_forward(e, m, p))
    fwd_bf16 = jax.jit(lambda e, m, p: global_discriminator_forward(
        e, m, p, compute_dtype=jnp.bfloat16))

    ref = jax.block_until_ready(reference_forward(E, M, params))

    out = jax.block_until_ready(fwd_f32(E, M, params))
    assert out.shape == (B, 1), out.shape
    assert jnp.allclose(out, ref, rtol=1e-4, atol=1e-4), (out, ref)

    # bf16 operands with f32 MXU accumulation: looser tolerance vs f32 reference.
    out_bf16 = jax.block_until_ready(fwd_bf16(E, M, params))
    assert out_bf16.shape == (B, 1), out_bf16.shape
    assert jnp.allclose(out_bf16, ref, rtol=5e-2, atol=2e-2), (out_bf16, ref)

    print("KERNEL_OK")
</pallas_src>

<mosaic_0001>
module attributes {stable_mosaic.version = 11 : i64} {
  func.func @conv_block_kernel(%arg0: i32, %arg1: memref<2x12x32xf32, #tpu.memory_space<vmem>>, %arg2: memref<96x16xf32, #tpu.memory_space<vmem>>, %arg3: memref<1x16xf32, #tpu.memory_space<vmem>>, %arg4: memref<48x8xf32, #tpu.memory_space<vmem>>, %arg5: memref<1x8xf32, #tpu.memory_space<vmem>>, %arg6: memref<2x8x8xf32, #tpu.memory_space<vmem>>) attributes {dimension_semantics = [#tpu.dimension_semantics<parallel>], iteration_bounds = array<i64: 1>, scalar_prefetch = 0 : i64, scratch_operands = 0 : i64, tpu.core_type = #tpu.core_type<tc>, window_params = [{transform_indices = @transform_0, window_bounds = array<i64: 2, 12, 32>}, {pipeline_mode = #tpu.pipeline_mode<synchronous>, transform_indices = @transform_1, window_bounds = array<i64: 96, 16>}, {pipeline_mode = #tpu.pipeline_mode<synchronous>, transform_indices = @transform_2, window_bounds = array<i64: 1, 16>}, {pipeline_mode = #tpu.pipeline_mode<synchronous>, transform_indices = @transform_3, window_bounds = array<i64: 48, 8>}, {pipeline_mode = #tpu.pipeline_mode<synchronous>, transform_indices = @transform_4, window_bounds = array<i64: 1, 8>}, {transform_indices = @transform_5, window_bounds = array<i64: 2, 8, 8>}]} {
    %c0 = arith.constant 0 : index
    %c0_0 = arith.constant 0 : index
    %0 = vector.load %arg2[%c0, %c0_0] : memref<96x16xf32, #tpu.memory_space<vmem>>, vector<96x16xf32>
    %c0_1 = arith.constant 0 : index
    %c0_2 = arith.constant 0 : index
    %1 = vector.load %arg4[%c0_1, %c0_2] : memref<48x8xf32, #tpu.memory_space<vmem>>, vector<48x8xf32>
    %c0_3 = arith.constant 0 : index
    %c0_4 = arith.constant 0 : index
    %2 = vector.load %arg3[%c0_3, %c0_4] : memref<1x16xf32, #tpu.memory_space<vmem>>, vector<1x16xf32>
    %3 = vector.shape_cast %2 : vector<1x16xf32> to vector<16xf32>
    %c0_5 = arith.constant 0 : index
    %c0_6 = arith.constant 0 : index
    %4 = vector.load %arg5[%c0_5, %c0_6] : memref<1x8xf32, #tpu.memory_space<vmem>>, vector<1x8xf32>
    %5 = vector.shape_cast %4 : vector<1x8xf32> to vector<8xf32>
    %c0_7 = arith.constant 0 : index
    %c0_8 = arith.constant 0 : index
    %c0_9 = arith.constant 0 : index
    %6 = vector.load %arg1[%c0_7, %c0_8, %c0_9] : memref<2x12x32xf32, #tpu.memory_space<vmem>>, vector<1x12x32xf32>
    %7 = vector.shape_cast %6 : vector<1x12x32xf32> to vector<12x32xf32>
    %8 = vector.extract_strided_slice %7 {offsets = [0, 0], sizes = [10, 32], strides = [1, 1]} : vector<12x32xf32> to vector<10x32xf32>
    %9 = vector.extract_strided_slice %7 {offsets = [1, 0], sizes = [10, 32], strides = [1, 1]} : vector<12x32xf32> to vector<10x32xf32>
    %10 = vector.extract_strided_slice %7 {offsets = [2, 0], sizes = [10, 32], strides = [1, 1]} : vector<12x32xf32> to vector<10x32xf32>
    %11 = tpu.concatenate %8, %9, %10 in 1 : vector<10x32xf32>, vector<10x32xf32>, vector<10x32xf32> -> vector<10x96xf32>
    %cst = arith.constant dense<0.000000e+00> : vector<10x16xf32>
    %12 = tpu.matmul %11, %0, %cst {dimension_numbers = #tpu.dot_dimension_numbers<[1], [0], [0], [1], [0, 0, 1, 1], [], []>} : vector<10x96xf32>, vector<96x16xf32>, vector<10x16xf32> -> vector<10x16xf32>
    %13 = vector.shape_cast %3 : vector<16xf32> to vector<1x16xf32>
    %14 = vector.broadcast %13 : vector<1x16xf32> to vector<10x16xf32>
    %15 = arith.addf %12, %14 : vector<10x16xf32>
    %cst_10 = arith.constant 0.000000e+00 : f32
    %16 = vector.broadcast %cst_10 : f32 to vector<10x16xf32>
    %17 = arith.maximumf %15, %16 : vector<10x16xf32>
    %18 = vector.extract_strided_slice %17 {offsets = [0, 0], sizes = [8, 16], strides = [1, 1]} : vector<10x16xf32> to vector<8x16xf32>
    %19 = vector.extract_strided_slice %17 {offsets = [1, 0], sizes = [8, 16], strides = [1, 1]} : vector<10x16xf32> to vector<8x16xf32>
    %20 = vector.extract_strided_slice %17 {offsets = [2, 0], sizes = [8, 16], strides = [1, 1]} : vector<10x16xf32> to vector<8x16xf32>
    %21 = tpu.concatenate %18, %19, %20 in 1 : vector<8x16xf32>, vector<8x16xf32>, vector<8x16xf32> -> vector<8x48xf32>
    %cst_11 = arith.constant dense<0.000000e+00> : vector<8x8xf32>
    %22 = tpu.matmul %21, %1, %cst_11 {dimension_numbers = #tpu.dot_dimension_numbers<[1], [0], [0], [1], [0, 0, 1, 1], [], []>} : vector<8x48xf32>, vector<48x8xf32>, vector<8x8xf32> -> vector<8x8xf32>
    %23 = vector.shape_cast %5 : vector<8xf32> to vector<1x8xf32>
    %24 = vector.broadcast %23 : vector<1x8xf32> to vector<8x8xf32>
    %25 = arith.addf %22, %24 : vector<8x8xf32>
    %c0_12 = arith.constant 0 : index
    %c0_13 = arith.constant 0 : index
    %c0_14 = arith.constant 0 : index
    %26 = vector.load %arg6[%c0_12, %c0_13, %c0_14] : memref<2x8x8xf32, #tpu.memory_space<vmem>>, vector<1x8x8xf32>
    %27 = vector.shape_cast %26 : vector<1x8x8xf32> to vector<8x8xf32>
    %28 = vector.shape_cast %25 : vector<8x8xf32> to vector<1x8x8xf32>
    tpu.vector_store %arg6[%c0_12, %c0_13, %c0_14], %28 {strides = array<i32>} : memref<2x8x8xf32, #tpu.memory_space<vmem>>, vector<1x8x8xf32>,
    %c1 = arith.constant 1 : index
    %c0_15 = arith.constant 0 : index
    %c0_16 = arith.constant 0 : index
    %29 = vector.load %arg1[%c1, %c0_15, %c0_16] : memref<2x12x32xf32, #tpu.memory_space<vmem>>, vector<1x12x32xf32>
    %30 = vector.shape_cast %29 : vector<1x12x32xf32> to vector<12x32xf32>
    %31 = vector.extract_strided_slice %30 {offsets = [0, 0], sizes = [10, 32], strides = [1, 1]} : vector<12x32xf32> to vector<10x32xf32>
    %32 = vector.extract_strided_slice %30 {offsets = [1, 0], sizes = [10, 32], strides = [1, 1]} : vector<12x32xf32> to vector<10x32xf32>
    %33 = vector.extract_strided_slice %30 {offsets = [2, 0], sizes = [10, 32], strides = [1, 1]} : vector<12x32xf32> to vector<10x32xf32>
    %34 = tpu.concatenate %31, %32, %33 in 1 : vector<10x32xf32>, vector<10x32xf32>, vector<10x32xf32> -> vector<10x96xf32>
    %cst_17 = arith.constant dense<0.000000e+00> : vector<10x16xf32>
    %35 = tpu.matmul %34, %0, %cst_17 {dimension_numbers = #tpu.dot_dimension_numbers<[1], [0], [0], [1], [0, 0, 1, 1], [], []>} : vector<10x96xf32>, vector<96x16xf32>, vector<10x16xf32> -> vector<10x16xf32>
    %36 = vector.shape_cast %3 : vector<16xf32> to vector<1x16xf32>
    %37 = vector.broadcast %36 : vector<1x16xf32> to vector<10x16xf32>
    %38 = arith.addf %35, %37 : vector<10x16xf32>
    %cst_18 = arith.constant 0.000000e+00 : f32
    %39 = vector.broadcast %cst_18 : f32 to vector<10x16xf32>
    %40 = arith.maximumf %38, %39 : vector<10x16xf32>
    %41 = vector.extract_strided_slice %40 {offsets = [0, 0], sizes = [8, 16], strides = [1, 1]} : vector<10x16xf32> to vector<8x16xf32>
    %42 = vector.extract_strided_slice %40 {offsets = [1, 0], sizes = [8, 16], strides = [1, 1]} : vector<10x16xf32> to vector<8x16xf32>
    %43 = vector.extract_strided_slice %40 {offsets = [2, 0], sizes = [8, 16], strides = [1, 1]} : vector<10x16xf32> to vector<8x16xf32>
    %44 = tpu.concatenate %41, %42, %43 in 1 : vector<8x16xf32>, vector<8x16xf32>, vector<8x16xf32> -> vector<8x48xf32>
    %cst_19 = arith.constant dense<0.000000e+00> : vector<8x8xf32>
    %45 = tpu.matmul %44, %1, %cst_19 {dimension_numbers = #tpu.dot_dimension_numbers<[1], [0], [0], [1], [0, 0, 1, 1], [], []>} : vector<8x48xf32>, vector<48x8xf32>, vector<8x8xf32> -> vector<8x8xf32>
    %46 = vector.shape_cast %5 : vector<8xf32> to vector<1x8xf32>
    %47 = vector.broadcast %46 : vector<1x8xf32> to vector<8x8xf32>
    %48 = arith.addf %45, %47 : vector<8x8xf32>
    %c1_20 = arith.constant 1 : index
    %c0_21 = arith.constant 0 : index
    %c0_22 = arith.constant 0 : index
    %49 = vector.load %arg6[%c1_20, %c0_21, %c0_22] : memref<2x8x8xf32, #tpu.memory_space<vmem>>, vector<1x8x8xf32>
    %50 = vector.shape_cast %49 : vector<1x8x8xf32> to vector<8x8xf32>
    %51 = vector.shape_cast %48 : vector<8x8xf32> to vector<1x8x8xf32>
    tpu.vector_store %arg6[%c1_20, %c0_21, %c0_22], %51 {strides = array<i32>} : memref<2x8x8xf32, #tpu.memory_space<vmem>>, vector<1x8x8xf32>,
    return
  }
  func.func @transform_0(%arg0: i32) -> (i32, i32, i32) {
    %c0_i32 = arith.constant 0 : i32
    %c0_i32_0 = arith.constant 0 : i32
    %c0_i32_1 = arith.constant 0 : i32
    return %arg0, %c0_i32, %c0_i32_0 : i32, i32, i32
  }
  func.func @transform_1(%arg0: i32) -> (i32, i32) {
    %c0_i32 = arith.constant 0 : i32
    %c0_i32_0 = arith.constant 0 : i32
    %c0_i32_1 = arith.constant 0 : i32
    return %c0_i32, %c0_i32_0 : i32, i32
  }
  func.func @transform_2(%arg0: i32) -> (i32, i32) {
    %c0_i32 = arith.constant 0 : i32
    %c0_i32_0 = arith.constant 0 : i32
    %c0_i32_1 = arith.constant 0 : i32
    return %c0_i32, %c0_i32_0 : i32, i32
  }
  func.func @transform_3(%arg0: i32) -> (i32, i32) {
    %c0_i32 = arith.constant 0 : i32
    %c0_i32_0 = arith.constant 0 : i32
    %c0_i32_1 = arith.constant 0 : i32
    return %c0_i32, %c0_i32_0 : i32, i32
  }
  func.func @transform_4(%arg0: i32) -> (i32, i32) {
    %c0_i32 = arith.constant 0 : i32
    %c0_i32_0 = arith.constant 0 : i32
    %c0_i32_1 = arith.constant 0 : i32
    return %c0_i32, %c0_i32_0 : i32, i32
  }
  func.func @transform_5(%arg0: i32) -> (i32, i32, i32) {
    %c0_i32 = arith.constant 0 : i32
    %c0_i32_0 = arith.constant 0 : i32
    %c0_i32_1 = arith.constant 0 : i32
    return %arg0, %c0_i32, %c0_i32_0 : i32, i32, i32
  }
}

module attributes {stable_mosaic.version = 11 : i64} {
  func.func @mlp_kernel(%arg0: i32, %arg1: i32, %arg2: memref<2x16xf32, #tpu.memory_space<vmem>>, %arg3: memref<2x64xf32, #tpu.memory_space<vmem>>, %arg4: memref<16x32xf32, #tpu.memory_space<vmem>>, %arg5: memref<64x32xf32, #tpu.memory_space<vmem>>, %arg6: memref<1x32xf32, #tpu.memory_space<vmem>>, %arg7: memref<32x32xf32, #tpu.memory_space<vmem>>, %arg8: memref<1x32xf32, #tpu.memory_space<vmem>>, %arg9: memref<32x1xf32, #tpu.memory_space<vmem>>, %arg10: memref<1x1xf32, #tpu.memory_space<vmem>>, %arg11: memref<2x1xf32, #tpu.memory_space<vmem>>, %arg12: memref<2x32xf32, #tpu.memory_space<vmem>>) attributes {dimension_semantics = [#tpu.dimension_semantics<parallel>, #tpu.dimension_semantics<arbitrary>], iteration_bounds = array<i64: 1, 1>, scalar_prefetch = 0 : i64, scratch_operands = 1 : i64, tpu.core_type = #tpu.core_type<tc>, window_params = [{transform_indices = @transform_0, window_bounds = array<i64: 2, 16>}, {transform_indices = @transform_1, window_bounds = array<i64: 2, 64>}, {pipeline_mode = #tpu.pipeline_mode<synchronous>, transform_indices = @transform_2, window_bounds = array<i64: 16, 32>}, {transform_indices = @transform_3, window_bounds = array<i64: 64, 32>}, {pipeline_mode = #tpu.pipeline_mode<synchronous>, transform_indices = @transform_4, window_bounds = array<i64: 1, 32>}, {pipeline_mode = #tpu.pipeline_mode<synchronous>, transform_indices = @transform_5, window_bounds = array<i64: 32, 32>}, {pipeline_mode = #tpu.pipeline_mode<synchronous>, transform_indices = @transform_6, window_bounds = array<i64: 1, 32>}, {pipeline_mode = #tpu.pipeline_mode<synchronous>, transform_indices = @transform_7, window_bounds = array<i64: 32, 1>}, {pipeline_mode = #tpu.pipeline_mode<synchronous>, transform_indices = @transform_8, window_bounds = array<i64: 1, 1>}, {transform_indices = @transform_9, window_bounds = array<i64: 2, 1>}]} {
    %c0_i32 = arith.constant 0 : i32
    %0 = arith.cmpi eq, %arg1, %c0_i32 : i32
    %1 = arith.extui %0 : i1 to i32
    %c0_i32_0 = arith.constant 0 : i32
    %2 = arith.cmpi ne, %1, %c0_i32_0 : i32
    scf.if %2 {
      %cst_10 = arith.constant 0.000000e+00 : f32
      %12 = vector.broadcast %cst_10 : f32 to vector<2x32xf32>
      %c0_11 = arith.constant 0 : index
      %c0_12 = arith.constant 0 : index
      %13 = vector.load %arg12[%c0_11, %c0_12] : memref<2x32xf32, #tpu.memory_space<vmem>>, vector<2x32xf32>
      tpu.vector_store %arg12[%c0_11, %c0_12], %12 {strides = array<i32>} : memref<2x32xf32, #tpu.memory_space<vmem>>, vector<2x32xf32>,
    } else {
    }
    %c0 = arith.constant 0 : index
    %c0_1 = arith.constant 0 : index
    %3 = vector.load %arg12[%c0, %c0_1] : memref<2x32xf32, #tpu.memory_space<vmem>>, vector<2x32xf32>
    %c0_2 = arith.constant 0 : index
    %c0_3 = arith.constant 0 : index
    %4 = vector.load %arg3[%c0_2, %c0_3] : memref<2x64xf32, #tpu.memory_space<vmem>>, vector<2x64xf32>
    %c0_4 = arith.constant 0 : index
    %c0_5 = arith.constant 0 : index
    %5 = vector.load %arg5[%c0_4, %c0_5] : memref<64x32xf32, #tpu.memory_space<vmem>>, vector<64x32xf32>
    %cst = arith.constant dense<0.000000e+00> : vector<2x32xf32>
    %6 = tpu.matmul %4, %5, %cst {dimension_numbers = #tpu.dot_dimension_numbers<[1], [0], [0], [1], [0, 0, 1, 1], [], []>} : vector<2x64xf32>, vector<64x32xf32>, vector<2x32xf32> -> vector<2x32xf32>
    %7 = arith.addf %3, %6 : vector<2x32xf32>
    %c0_6 = arith.constant 0 : index
    %c0_7 = arith.constant 0 : index
    %8 = vector.load %arg12[%c0_6, %c0_7] : memref<2x32xf32, #tpu.memory_space<vmem>>, vector<2x32xf32>
    tpu.vector_store %arg12[%c0_6, %c0_7], %7 {strides = array<i32>} : memref<2x32xf32, #tpu.memory_space<vmem>>, vector<2x32xf32>,
    %c0_i32_8 = arith.constant 0 : i32
    %9 = arith.cmpi eq, %arg1, %c0_i32_8 : i32
    %10 = arith.extui %9 : i1 to i32
    %c0_i32_9 = arith.constant 0 : i32
    %11 = arith.cmpi ne, %10, %c0_i32_9 : i32
    scf.if %11 {
      %c0_10 = arith.constant 0 : index
      %c0_11 = arith.constant 0 : index
      %12 = vector.load %arg12[%c0_10, %c0_11] : memref<2x32xf32, #tpu.memory_space<vmem>>, vector<2x32xf32>
      %c0_12 = arith.constant 0 : index
      %c0_13 = arith.constant 0 : index
      %13 = vector.load %arg2[%c0_12, %c0_13] : memref<2x16xf32, #tpu.memory_space<vmem>>, vector<2x16xf32>
      %c0_14 = arith.constant 0 : index
      %c0_15 = arith.constant 0 : index
      %14 = vector.load %arg4[%c0_14, %c0_15] : memref<16x32xf32, #tpu.memory_space<vmem>>, vector<16x32xf32>
      %cst_16 = arith.constant dense<0.000000e+00> : vector<2x32xf32>
      %15 = tpu.matmul %13, %14, %cst_16 {dimension_numbers = #tpu.dot_dimension_numbers<[1], [0], [0], [1], [0, 0, 1, 1], [], []>} : vector<2x16xf32>, vector<16x32xf32>, vector<2x32xf32> -> vector<2x32xf32>
      %16 = arith.addf %12, %15 : vector<2x32xf32>
      %c0_17 = arith.constant 0 : index
      %c0_18 = arith.constant 0 : index
      %17 = vector.load %arg6[%c0_17, %c0_18] : memref<1x32xf32, #tpu.memory_space<vmem>>, vector<1x32xf32>
      %18 = vector.shape_cast %17 : vector<1x32xf32> to vector<32xf32>
      %19 = vector.shape_cast %18 : vector<32xf32> to vector<1x32xf32>
      %20 = vector.broadcast %19 : vector<1x32xf32> to vector<2x32xf32>
      %21 = arith.addf %16, %20 : vector<2x32xf32>
      %cst_19 = arith.constant 0.000000e+00 : f32
      %22 = vector.broadcast %cst_19 : f32 to vector<2x32xf32>
      %23 = arith.maximumf %21, %22 : vector<2x32xf32>
      %c0_20 = arith.constant 0 : index
      %c0_21 = arith.constant 0 : index
      %24 = vector.load %arg7[%c0_20, %c0_21] : memref<32x32xf32, #tpu.memory_space<vmem>>, vector<32x32xf32>
      %cst_22 = arith.constant dense<0.000000e+00> : vector<2x32xf32>
      %25 = tpu.matmul %23, %24, %cst_22 {dimension_numbers = #tpu.dot_dimension_numbers<[1], [0], [0], [1], [0, 0, 1, 1], [], []>} : vector<2x32xf32>, vector<32x32xf32>, vector<2x32xf32> -> vector<2x32xf32>
      %c0_23 = arith.constant 0 : index
      %c0_24 = arith.constant 0 : index
      %26 = vector.load %arg8[%c0_23, %c0_24] : memref<1x32xf32, #tpu.memory_space<vmem>>, vector<1x32xf32>
      %27 = vector.shape_cast %26 : vector<1x32xf32> to vector<32xf32>
      %28 = vector.shape_cast %27 : vector<32xf32> to vector<1x32xf32>
      %29 = vector.broadcast %28 : vector<1x32xf32> to vector<2x32xf32>
      %30 = arith.addf %25, %29 : vector<2x32xf32>
      %cst_25 = arith.constant 0.000000e+00 : f32
      %31 = vector.broadcast %cst_25 : f32 to vector<2x32xf32>
      %32 = arith.maximumf %30, %31 : vector<2x32xf32>
      %c0_26 = arith.constant 0 : index
      %c0_27 = arith.constant 0 : index
      %33 = vector.load %arg9[%c0_26, %c0_27] : memref<32x1xf32, #tpu.memory_space<vmem>>, vector<32x1xf32>
      %cst_28 = arith.constant dense<0.000000e+00> : vector<2x1xf32>
      %34 = tpu.matmul %32, %33, %cst_28 {dimension_numbers = #tpu.dot_dimension_numbers<[1], [0], [0], [1], [0, 0, 1, 1], [], []>} : vector<2x32xf32>, vector<32x1xf32>, vector<2x1xf32> -> vector<2x1xf32>
      %c0_29 = arith.constant 0 : index
      %c0_30 = arith.constant 0 : index
      %35 = vector.load %arg10[%c0_29, %c0_30] : memref<1x1xf32, #tpu.memory_space<vmem>>, vector<1x1xf32>
      %36 = vector.shape_cast %35 : vector<1x1xf32> to vector<1xf32>
      %37 = vector.shape_cast %36 : vector<1xf32> to vector<1x1xf32>
      %38 = vector.broadcast %37 : vector<1x1xf32> to vector<2x1xf32>
      %39 = arith.addf %34, %38 : vector<2x1xf32>
      %c0_31 = arith.constant 0 : index
      %c0_32 = arith.constant 0 : index
      %40 = vector.load %arg11[%c0_31, %c0_32] : memref<2x1xf32, #tpu.memory_space<vmem>>, vector<2x1xf32>
      tpu.vector_store %arg11[%c0_31, %c0_32], %39 {strides = array<i32>} : memref<2x1xf32, #tpu.memory_space<vmem>>, vector<2x1xf32>,
    } else {
    }
    return
  }
  func.func @transform_0(%arg0: i32, %arg1: i32) -> (i32, i32) {
    %c0_i32 = arith.constant 0 : i32
    %c0_i32_0 = arith.constant 0 : i32
    return %arg0, %c0_i32 : i32, i32
  }
  func.func @transform_1(%arg0: i32, %arg1: i32) -> (i32, i32) {
    %c0_i32 = arith.constant 0 : i32
    return %arg0, %arg1 : i32, i32
  }
  func.func @transform_2(%arg0: i32, %arg1: i32) -> (i32, i32) {
    %c0_i32 = arith.constant 0 : i32
    %c0_i32_0 = arith.constant 0 : i32
    %c0_i32_1 = arith.constant 0 : i32
    return %c0_i32, %c0_i32_0 : i32, i32
  }
  func.func @transform_3(%arg0: i32, %arg1: i32) -> (i32, i32) {
    %c0_i32 = arith.constant 0 : i32
    %c0_i32_0 = arith.constant 0 : i32
    return %arg1, %c0_i32 : i32, i32
  }
  func.func @transform_4(%arg0: i32, %arg1: i32) -> (i32, i32) {
    %c0_i32 = arith.constant 0 : i32
    %c0_i32_0 = arith.constant 0 : i32
    %c0_i32_1 = arith.constant 0 : i32
    return %c0_i32, %c0_i32_0 : i32, i32
  }
  func.func @transform_5(%arg0: i32, %arg1: i32) -> (i32, i32) {
    %c0_i32 = arith.constant 0 : i32
    %c0_i32_0 = arith.constant 0 : i32
    %c0_i32_1 = arith.constant 0 : i32
    return %c0_i32, %c0_i32_0 : i32, i32
  }
  func.func @transform_6(%arg0: i32, %arg1: i32) -> (i32, i32) {
    %c0_i32 = arith.constant 0 : i32
    %c0_i32_0 = arith.constant 0 : i32
    %c0_i32_1 = arith.constant 0 : i32
    return %c0_i32, %c0_i32_0 : i32, i32
  }
  func.func @transform_7(%arg0: i32, %arg1: i32) -> (i32, i32) {
    %c0_i32 = arith.constant 0 : i32
    %c0_i32_0 = arith.constant 0 : i32
    %c0_i32_1 = arith.constant 0 : i32
    return %c0_i32, %c0_i32_0 : i32, i32
  }
  func.func @transform_8(%arg0: i32, %arg1: i32) -> (i32, i32) {
    %c0_i32 = arith.constant 0 : i32
    %c0_i32_0 = arith.constant 0 : i32
    %c0_i32_1 = arith.constant 0 : i32
    return %c0_i32, %c0_i32_0 : i32, i32
  }
  func.func @transform_9(%arg0: i32, %arg1: i32) -> (i32, i32) {
    %c0_i32 = arith.constant 0 : i32
    %c0_i32_0 = arith.constant 0 : i32
    return %arg0, %c0_i32 : i32, i32
  }
}

</mosaic_0001>

<llo_original>
// kernel: _lambda_.2
$region0: #{_lambda_.2}
  #allocation0 [shape = 'u32[]', space=smem, size = 0x4, offset = 0x4, fixed_abs, tag = 'smem constant byte address 0x4 - core index']
  #allocation1 [shape = 'u32[144,128]{1,0:T(1,128)}', space=vmem, size = 0x12000, scoped, tag = 'internal scratch']
  %s0 = inlined_call_operand.vmem [shape: f32[2,12,32], index: 0, kind: input, shape index: {}]
  %s1 = inlined_call_operand.vmem [shape: f32[96,16], index: 1, kind: input, shape index: {}]
  %s2 = inlined_call_operand.vmem [shape: f32[1,16], index: 2, kind: input, shape index: {}]
  %s3 = inlined_call_operand.vmem [shape: f32[48,8], index: 3, kind: input, shape index: {}]
  %s4 = inlined_call_operand.vmem [shape: f32[1,8], index: 4, kind: input, shape index: {}]
  %s5 = inlined_call_operand.vmem [shape: f32[2,8,8], index: 5, kind: output, shape index: {}]
  %s6 = sld [smem:[#allocation0]]
  $region30: #{_lambda_.2} parent=0
    _
  %s8 = ssub.s32 1, %s6
  %s9 = scalar_select 0, %s8, %s6
  // Predicated region
  $region2: #{_lambda_.2} parent=0 // pred_check
    _
  $region3: #{_lambda_.2} parent=0 // pred_check_branch
    %11 = sbr.rel (0) target = $region5
  $region4: #{_lambda_.2} parent=0 // pred_region
    _
  $region5: #{_lambda_.2} parent=0 // pred_fallthru
    _
  // Predicated region
  $region6: #{_lambda_.2} parent=0 // pred_check
    _
  $region7: #{_lambda_.2} parent=0 // pred_check_branch
    %13 = sbr.rel (0) target = $region9
  $region8: #{_lambda_.2} parent=0 // pred_region
    _
  $region9: #{_lambda_.2} parent=0 // pred_fallthru
    _
  // Predicated region
  $region10: #{_lambda_.2} parent=0 // pred_check
    _
  $region11: #{_lambda_.2} parent=0 // pred_check_branch
    %15 = sbr.rel (0) target = $region13
  $region12: #{_lambda_.2} parent=0 // pred_region
    _
  $region13: #{_lambda_.2} parent=0 // pred_fallthru
    _
  // Predicated region
  $region14: #{_lambda_.2} parent=0 // pred_check
    _
  $region15: #{_lambda_.2} parent=0 // pred_check_branch
    %17 = sbr.rel (0) target = $region17
  $region16: #{_lambda_.2} parent=0 // pred_region
    _
  $region17: #{_lambda_.2} parent=0 // pred_fallthru
    _
  // Predicated region
  $region18: #{_lambda_.2} parent=0 // pred_check
    _
  $region19: #{_lambda_.2} parent=0 // pred_check_branch
    %19 = sbr.rel (0) target = $region21
  $region20: #{_lambda_.2} parent=0 // pred_region
    _
  $region21: #{_lambda_.2} parent=0 // pred_fallthru
    _
  %v20 = vld [vmem:[%s1] sm:$0xff]
  %v21 = vld [vmem:[%s1 + $0x8] sm:$0xff]
  %v22 = vld [vmem:[%s1 + $0x10] sm:$0xff]
  %v23 = vld [vmem:[%s1 + $0x18] sm:$0xff]
  %v24 = vld [vmem:[%s1 + $0x20] sm:$0xff]
  %v25 = vld [vmem:[%s1 + $0x28] sm:$0xff]
  %v26 = vld [vmem:[%s1 + $0x30] sm:$0xff]
  %v27 = vld [vmem:[%s1 + $0x38] sm:$0xff]
  %v28 = vld [vmem:[%s1 + $0x40] sm:$0xff]
  %v29 = vld [vmem:[%s1 + $0x48] sm:$0xff]
  %v30 = vld [vmem:[%s1 + $0x50] sm:$0xff]
  %v31 = vld [vmem:[%s1 + $0x58] sm:$0xff]
  %v32 = vld [vmem:[%s3] sm:$0xff]
  %v33 = vld [vmem:[%s3 + $0x8] sm:$0xff]
  %v34 = vld [vmem:[%s3 + $0x10] sm:$0xff]
  %v35 = vld [vmem:[%s3 + $0x18] sm:$0xff]
  %v36 = vld [vmem:[%s3 + $0x20] sm:$0xff]
  %v37 = vld [vmem:[%s3 + $0x28] sm:$0xff]
  %v38 = vld [vmem:[%s2] sm:$0x1]
  %v39 = vld [vmem:[%s4] sm:$0x1]
  %v40 = vld [vmem:[%s0] sm:$0xff]
  %v41 = vld [vmem:[%s0 + $0x8] sm:$0xf]
  %vm44 = vcmask 1046528
  %v45 = vrot.slane %v40, 1
  %v46 = vrot.slane %v41, 1
  %v47 = vsel %vm44, %v45, %v46
  %48 = vrot.lane.b32.xlu0 %v47, 32
  %v49 = vpop.permute.xlu0 %48
  %50 = vrot.lane.b32.xlu0 %v46, 32
  %v51 = vpop.permute.xlu0 %50
  %vm54 = vcmask 1045504
  %v55 = vrot.slane %v40, 2
  %v56 = vrot.slane %v41, 2
  %v57 = vsel %vm54, %v55, %v56
  %58 = vrot.lane.b32.xlu0 %v57, 64
  %v59 = vpop.permute.xlu0 %58
  %60 = vrot.lane.b32.xlu0 %v56, 64
  %v61 = vpop.permute.xlu0 %60
  %vm64 = vcmask 261120
  %v65 = vsel %vm64, %v40, %v49
  %v66 = vsel %vm64, %v41, %v51
  %vm67 = vcmask 523264
  %v68 = vsel %vm67, %v65, %v59
  %v69 = vsel %vm67, %v66, %v61
  %v71 = vlaneseq
  %v72 = vshrl.u32 %v71, 7
  %v73 = vsub.s32 0, %v72
  %v74 = vrot.slane %v38, %v73
  %vm76 = vcmask 785408
  %v78 = vsel %vm76, %v68, 0
  %v81 = vsel %vm76, %v69, 0
  %83 = vmatprep.subr.mxu0 0.0
  %84 = vmatpush1.msra.mxu0 %v20
  %85 = vmatprep.subr.mxu0 0.0
  %86 = vmatpush1.msra.mxu0 %v21
  %87 = vmatprep.subr.mxu0 0.0
  %88 = vmatpush1.msra.mxu0 %v22
  %89 = vmatprep.subr.mxu0 0.0
  %90 = vmatpush1.msra.mxu0 %v23
  %91 = vmatprep.subr.mxu0 0.0
  %92 = vmatpush1.msra.mxu0 %v24
  %93 = vmatprep.subr.mxu0 0.0
  %94 = vmatpush1.msra.mxu0 %v25
  %95 = vmatprep.subr.mxu0 0.0
  %96 = vmatpush1.msra.mxu0 %v26
  %97 = vmatprep.subr.mxu0 0.0
  %98 = vmatpush1.msra.mxu0 %v27
  %99 = vmatprep.subr.mxu0 0.0
  %100 = vmatpush1.msra.mxu0 %v28
  %101 = vmatprep.subr.mxu0 0.0
  %102 = vmatpush1.msra.mxu0 %v29
  %103 = vmatprep.subr.mxu0 0.0
  %104 = vmatpush1.msra.mxu0 %v30
  %105 = vmatprep.subr.mxu0 0.0
  %106 = vmatpush1.msra.mxu0 %v31
  %107 = vmatprep.subr.mxu0 0.0
  %108 = vmatpush1.msra.mxu0 0.0
  %109 = vmatprep.subr.mxu0 0.0
  %110 = vmatpush1.msra.mxu0 0.0
  %111 = vmatprep.subr.mxu0 0.0
  %112 = vmatpush1.msra.mxu0 0.0
  %113 = vmatprep.subr.mxu0 0.0
  %114 = vmatpush1.msra.mxu0 0.0
  %115 = vmatprep.subr.mxu0 0.0
  %116 = vmatpush1.msra.mxu0 0.0
  %117 = vmatprep.subr.mxu0 0.0
  %118 = vmatpush1.msra.mxu0 0.0
  %119 = vmatprep.subr.mxu0 0.0
  %120 = vmatpush1.msra.mxu0 0.0
  %121 = vmatprep.subr.mxu0 0.0
  %122 = vmatpush1.msra.mxu0 0.0
  %123 = vmatprep.subr.mxu0 0.0
  %124 = vmatpush1.msra.mxu0 0.0
  %125 = vmatprep.subr.mxu0 0.0
  %126 = vmatpush1.msra.mxu0 0.0
  %127 = vmatprep.subr.mxu0 0.0
  %128 = vmatpush1.msra.mxu0 0.0
  %129 = vmatprep.subr.mxu0 0.0
  %130 = vmatpush1.msra.mxu0 0.0
  %131 = vmatprep.subr.mxu0 0.0
  %132 = vmatpush1.msra.mxu0 0.0
  %133 = vmatprep.subr.mxu0 0.0
  %134 = vmatpush1.msra.mxu0 0.0
  %135 = vmatprep.subr.mxu0 0.0
  %136 = vmatpush1.msra.mxu0 0.0
  %137 = vmatprep.subr.mxu0 0.0
  %138 = vmatpush1.msra.mxu0 0.0
  %139 = vmatprep.subr.mxu0 0.0
  %140 = vmatpush1.msra.mxu0 0.0
  %141 = vmatprep.subr.mxu0 0.0
  %142 = vmatpush1.msra.mxu0 0.0
  %143 = vmatprep.subr.mxu0 0.0
  %144 = vmatpush1.msra.mxu0 0.0
  %145 = vmatprep.subr.mxu0 0.0
  %146 = vmatpush1.msra.mxu0 0.0
  %147 = vmatprep.mubr.f32.mxu0 0.0
  %148 = vmatmul.mubr.f32.gmra.mrb[0].mxu0 %v78
  %v149 = vpop.f32.mrb[0].mxu0
  %v150 = vadd.f32 %v74, %v149
  %v151 = vpop.f32.mrb[0].mxu0
  %152 = vmatprep.mubr.f32.mxu0 0.0
  %153 = vmatmul.mubr.f32.gmra.mrb[0].mxu0 %v81
  %v154 = vpop.f32.mrb[0].mxu0
  %v155 = vadd.f32 %v74, %v154
  %v156 = vpop.f32.mrb[0].mxu0
  %157 = vdwg.mxu0
  %v158 = vmax.f32 %v150, 0.0
  %v159 = vmax.f32 %v155, 0.0
  %v162 = vrot.slane %v158, 1
  %v163 = vrot.slane %v159, 1
  %v164 = vsel %vm44, %v162, %v163
  %165 = vrot.lane.b32.xlu0 %v164, 16
  %v166 = vpop.permute.xlu0 %165
  %v168 = vrot.slane %v158, 2
  %v169 = vrot.slane %v159, 2
  %v170 = vsel %vm54, %v168, %v169
  %171 = vrot.lane.b32.xlu0 %v170, 32
  %v172 = vpop.permute.xlu0 %171
  %vm174 = vcmask 130048
  %v175 = vsel %vm174, %v158, %v166
  %v176 = vsel %vm64, %v175, %v172
  %v178 = vlaneseq
  %v179 = vshrl.u32 %v178, 7
  %v180 = vsub.s32 0, %v179
  %v181 = vrot.slane %v39, %v180
  %vm183 = vcmask 392192
  %v185 = vsel %vm183, %v176, 0
  %187 = vmatprep.subr.mxu0 0.0
  %188 = vmatpush1.msra.mxu0 %v32
  %189 = vmatprep.subr.mxu0 0.0
  %190 = vmatpush1.msra.mxu0 %v33
  %191 = vmatprep.subr.mxu0 0.0
  %192 = vmatpush1.msra.mxu0 %v34
  %193 = vmatprep.subr.mxu0 0.0
  %194 = vmatpush1.msra.mxu0 %v35
  %195 = vmatprep.subr.mxu0 0.0
  %196 = vmatpush1.msra.mxu0 %v36
  %197 = vmatprep.subr.mxu0 0.0
  %198 = vmatpush1.msra.mxu0 %v37
  %199 = vmatprep.subr.mxu0 0.0
  %200 = vmatpush1.msra.mxu0 0.0
  %201 = vmatprep.subr.mxu0 0.0
  %202 = vmatpush1.msra.mxu0 0.0
  %203 = vmatprep.subr.mxu0 0.0
  %204 = vmatpush1.msra.mxu0 0.0
  %205 = vmatprep.subr.mxu0 0.0
  %206 = vmatpush1.msra.mxu0 0.0
  %207 = vmatprep.subr.mxu0 0.0
  %208 = vmatpush1.msra.mxu0 0.0
  %209 = vmatprep.subr.mxu0 0.0
  %210 = vmatpush1.msra.mxu0 0.0
  %211 = vmatprep.subr.mxu0 0.0
  %212 = vmatpush1.msra.mxu0 0.0
  %213 = vmatprep.subr.mxu0 0.0
  %214 = vmatpush1.msra.mxu0 0.0
  %215 = vmatprep.subr.mxu0 0.0
  %216 = vmatpush1.msra.mxu0 0.0
  %217 = vmatprep.subr.mxu0 0.0
  %218 = vmatpush1.msra.mxu0 0.0
  %219 = vmatprep.subr.mxu0 0.0
  %220 = vmatpush1.msra.mxu0 0.0
  %221 = vmatprep.subr.mxu0 0.0
  %222 = vmatpush1.msra.mxu0 0.0
  %223 = vmatprep.subr.mxu0 0.0
  %224 = vmatpush1.msra.mxu0 0.0
  %225 = vmatprep.subr.mxu0 0.0
  %226 = vmatpush1.msra.mxu0 0.0
  %227 = vmatprep.subr.mxu0 0.0
  %228 = vmatpush1.msra.mxu0 0.0
  %229 = vmatprep.subr.mxu0 0.0
  %230 = vmatpush1.msra.mxu0 0.0
  %231 = vmatprep.subr.mxu0 0.0
  %232 = vmatpush1.msra.mxu0 0.0
  %233 = vmatprep.subr.mxu0 0.0
  %234 = vmatpush1.msra.mxu0 0.0
  %235 = vmatprep.subr.mxu0 0.0
  %236 = vmatpush1.msra.mxu0 0.0
  %237 = vmatprep.subr.mxu0 0.0
  %238 = vmatpush1.msra.mxu0 0.0
  %239 = vmatprep.subr.mxu0 0.0
  %240 = vmatpush1.msra.mxu0 0.0
  %241 = vmatprep.subr.mxu0 0.0
  %242 = vmatpush1.msra.mxu0 0.0
  %243 = vmatprep.subr.mxu0 0.0
  %244 = vmatpush1.msra.mxu0 0.0
  %245 = vmatprep.subr.mxu0 0.0
  %246 = vmatpush1.msra.mxu0 0.0
  %247 = vmatprep.subr.mxu0 0.0
  %248 = vmatpush1.msra.mxu0 0.0
  %249 = vmatprep.subr.mxu0 0.0
  %250 = vmatpush1.msra.mxu0 0.0
  %251 = vmatprep.mubr.f32.mxu0 0.0
  %252 = vmatmul.mubr.f32.gmra.mrb[0].mxu0 %v185
  %v253 = vpop.f32.mrb[0].mxu0
  %v254 = vadd.f32 %v181, %v253
  %v255 = vpop.f32.mrb[0].mxu0
  %256 = vdwg.mxu0
  %vm257 = vcmask 64512
  %258 = vst.msk [vmem:[%s5] sm:$0xff] %vm257, %v254
  %s259 = scalar_lea.vmem %s0, 16
  %v260 = vld [vmem:[%s259] sm:$0xff]
  %v261 = vld [vmem:[%s259 + $0x8] sm:$0xf]
  %v264 = vrot.slane %v260, 1
  %v265 = vrot.slane %v261, 1
  %v266 = vsel %vm44, %v264, %v265
  %267 = vrot.lane.b32.xlu0 %v266, 32
  %v268 = vpop.permute.xlu0 %267
  %269 = vrot.lane.b32.xlu0 %v265, 32
  %v270 = vpop.permute.xlu0 %269
  %v273 = vrot.slane %v260, 2
  %v274 = vrot.slane %v261, 2
  %v275 = vsel %vm54, %v273, %v274
  %276 = vrot.lane.b32.xlu0 %v275, 64
  %v277 = vpop.permute.xlu0 %276
  %278 = vrot.lane.b32.xlu0 %v274, 64
  %v279 = vpop.permute.xlu0 %278
  %v282 = vsel %vm64, %v260, %v268
  %v283 = vsel %vm64, %v261, %v270
  %v284 = vsel %vm67, %v282, %v277
  %v285 = vsel %vm67, %v283, %v279
  %v287 = vsel %vm76, %v284, 0
  %v290 = vsel %vm76, %v285, 0
  %292 = vmatprep.subr.mxu0 0.0
  %293 = vmatpush1.msra.mxu0 %v20
  %294 = vmatprep.subr.mxu0 0.0
  %295 = vmatpush1.msra.mxu0 %v21
  %296 = vmatprep.subr.mxu0 0.0
  %297 = vmatpush1.msra.mxu0 %v22
  %298 = vmatprep.subr.mxu0 0.0
  %299 = vmatpush1.msra.mxu0 %v23
  %300 = vmatprep.subr.mxu0 0.0
  %301 = vmatpush1.msra.mxu0 %v24
  %302 = vmatprep.subr.mxu0 0.0
  %303 = vmatpush1.msra.mxu0 %v25
  %304 = vmatprep.subr.mxu0 0.0
  %305 = vmatpush1.msra.mxu0 %v26
  %306 = vmatprep.subr.mxu0 0.0
  %307 = vmatpush1.msra.mxu0 %v27
  %308 = vmatprep.subr.mxu0 0.0
  %309 = vmatpush1.msra.mxu0 %v28
  %310 = vmatprep.subr.mxu0 0.0
  %311 = vmatpush1.msra.mxu0 %v29
  %312 = vmatprep.subr.mxu0 0.0
  %313 = vmatpush1.msra.mxu0 %v30
  %314 = vmatprep.subr.mxu0 0.0
  %315 = vmatpush1.msra.mxu0 %v31
  %316 = vmatprep.subr.mxu0 0.0
  %317 = vmatpush1.msra.mxu0 0.0
  %318 = vmatprep.subr.mxu0 0.0
  %319 = vmatpush1.msra.mxu0 0.0
  %320 = vmatprep.subr.mxu0 0.0
  %321 = vmatpush1.msra.mxu0 0.0
  %322 = vmatprep.subr.mxu0 0.0
  %323 = vmatpush1.msra.mxu0 0.0
  %324 = vmatprep.subr.mxu0 0.0
  %325 = vmatpush1.msra.mxu0 0.0
  %326 = vmatprep.subr.mxu0 0.0
  %327 = vmatpush1.msra.mxu0 0.0
  %328 = vmatprep.subr.mxu0 0.0
  %329 = vmatpush1.msra.mxu0 0.0
  %330 = vmatprep.subr.mxu0 0.0
  %331 = vmatpush1.msra.mxu0 0.0
  %332 = vmatprep.subr.mxu0 0.0
  %333 = vmatpush1.msra.mxu0 0.0
  %334 = vmatprep.subr.mxu0 0.0
  %335 = vmatpush1.msra.mxu0 0.0
  %336 = vmatprep.subr.mxu0 0.0
  %337 = vmatpush1.msra.mxu0 0.0
  %338 = vmatprep.subr.mxu0 0.0
  %339 = vmatpush1.msra.mxu0 0.0
  %340 = vmatprep.subr.mxu0 0.0
  %341 = vmatpush1.msra.mxu0 0.0
  %342 = vmatprep.subr.mxu0 0.0
  %343 = vmatpush1.msra.mxu0 0.0
  %344 = vmatprep.subr.mxu0 0.0
  %345 = vmatpush1.msra.mxu0 0.0
  %346 = vmatprep.subr.mxu0 0.0
  %347 = vmatpush1.msra.mxu0 0.0
  %348 = vmatprep.subr.mxu0 0.0
  %349 = vmatpush1.msra.mxu0 0.0
  %350 = vmatprep.subr.mxu0 0.0
  %351 = vmatpush1.msra.mxu0 0.0
  %352 = vmatprep.subr.mxu0 0.0
  %353 = vmatpush1.msra.mxu0 0.0
  %354 = vmatprep.subr.mxu0 0.0
  %355 = vmatpush1.msra.mxu0 0.0
  %356 = vmatprep.mubr.f32.mxu0 0.0
  %357 = vmatmul.mubr.f32.gmra.mrb[0].mxu0 %v287
  %v358 = vpop.f32.mrb[0].mxu0
  %v359 = vadd.f32 %v74, %v358
  %v360 = vpop.f32.mrb[0].mxu0
  %361 = vmatprep.mubr.f32.mxu0 0.0
  %362 = vmatmul.mubr.f32.gmra.mrb[0].mxu0 %v290
  %v363 = vpop.f32.mrb[0].mxu0
  %v364 = vadd.f32 %v74, %v363
  %v365 = vpop.f32.mrb[0].mxu0
  %366 = vdwg.mxu0
  %v367 = vmax.f32 %v359, 0.0
  %v368 = vmax.f32 %v364, 0.0
  %v371 = vrot.slane %v367, 1
  %v372 = vrot.slane %v368, 1
  %v373 = vsel %vm44, %v371, %v372
  %374 = vrot.lane.b32.xlu0 %v373, 16
  %v375 = vpop.permute.xlu0 %374
  %v377 = vrot.slane %v367, 2
  %v378 = vrot.slane %v368, 2
  %v379 = vsel %vm54, %v377, %v378
  %380 = vrot.lane.b32.xlu0 %v379, 32
  %v381 = vpop.permute.xlu0 %380
  %v383 = vsel %vm174, %v367, %v375
  %v384 = vsel %vm64, %v383, %v381
  %v386 = vsel %vm183, %v384, 0
  %388 = vmatprep.subr.mxu0 0.0
  %389 = vmatpush1.msra.mxu0 %v32
  %390 = vmatprep.subr.mxu0 0.0
  %391 = vmatpush1.msra.mxu0 %v33
  %392 = vmatprep.subr.mxu0 0.0
  %393 = vmatpush1.msra.mxu0 %v34
  %394 = vmatprep.subr.mxu0 0.0
  %395 = vmatpush1.msra.mxu0 %v35
  %396 = vmatprep.subr.mxu0 0.0
  %397 = vmatpush1.msra.mxu0 %v36
  %398 = vmatprep.subr.mxu0 0.0
  %399 = vmatpush1.msra.mxu0 %v37
  %400 = vmatprep.subr.mxu0 0.0
  %401 = vmatpush1.msra.mxu0 0.0
  %402 = vmatprep.subr.mxu0 0.0
  %403 = vmatpush1.msra.mxu0 0.0
  %404 = vmatprep.subr.mxu0 0.0
  %405 = vmatpush1.msra.mxu0 0.0
  %406 = vmatprep.subr.mxu0 0.0
  %407 = vmatpush1.msra.mxu0 0.0
  %408 = vmatprep.subr.mxu0 0.0
  %409 = vmatpush1.msra.mxu0 0.0
  %410 = vmatprep.subr.mxu0 0.0
  %411 = vmatpush1.msra.mxu0 0.0
  %412 = vmatprep.subr.mxu0 0.0
  %413 = vmatpush1.msra.mxu0 0.0
  %414 = vmatprep.subr.mxu0 0.0
  %415 = vmatpush1.msra.mxu0 0.0
  %416 = vmatprep.subr.mxu0 0.0
  %417 = vmatpush1.msra.mxu0 0.0
  %418 = vmatprep.subr.mxu0 0.0
  %419 = vmatpush1.msra.mxu0 0.0
  %420 = vmatprep.subr.mxu0 0.0
  %421 = vmatpush1.msra.mxu0 0.0
  %422 = vmatprep.subr.mxu0 0.0
  %423 = vmatpush1.msra.mxu0 0.0
  %424 = vmatprep.subr.mxu0 0.0
  %425 = vmatpush1.msra.mxu0 0.0
  %426 = vmatprep.subr.mxu0 0.0
  %427 = vmatpush1.msra.mxu0 0.0
  %428 = vmatprep.subr.mxu0 0.0
  %429 = vmatpush1.msra.mxu0 0.0
  %430 = vmatprep.subr.mxu0 0.0
  %431 = vmatpush1.msra.mxu0 0.0
  %432 = vmatprep.subr.mxu0 0.0
  %433 = vmatpush1.msra.mxu0 0.0
  %434 = vmatprep.subr.mxu0 0.0
  %435 = vmatpush1.msra.mxu0 0.0
  %436 = vmatprep.subr.mxu0 0.0
  %437 = vmatpush1.msra.mxu0 0.0
  %438 = vmatprep.subr.mxu0 0.0
  %439 = vmatpush1.msra.mxu0 0.0
  %440 = vmatprep.subr.mxu0 0.0
  %441 = vmatpush1.msra.mxu0 0.0
  %442 = vmatprep.subr.mxu0 0.0
  %443 = vmatpush1.msra.mxu0 0.0
  %444 = vmatprep.subr.mxu0 0.0
  %445 = vmatpush1.msra.mxu0 0.0
  %446 = vmatprep.subr.mxu0 0.0
  %447 = vmatpush1.msra.mxu0 0.0
  %448 = vmatprep.subr.mxu0 0.0
  %449 = vmatpush1.msra.mxu0 0.0
  %450 = vmatprep.subr.mxu0 0.0
  %451 = vmatpush1.msra.mxu0 0.0
  %452 = vmatprep.mubr.f32.mxu0 0.0
  %453 = vmatmul.mubr.f32.gmra.mrb[0].mxu0 %v386
  %v454 = vpop.f32.mrb[0].mxu0
  %v455 = vadd.f32 %v181, %v454
  %v456 = vpop.f32.mrb[0].mxu0
  %457 = vdwg.mxu0
  %s458 = scalar_lea.vmem %s5, 8
  %459 = vst.msk [vmem:[%s458] sm:$0xff] %vm257, %v455
  // Predicated region
  $region22: #{_lambda_.2} parent=0 // pred_check
    _
  $region23: #{_lambda_.2} parent=0 // pred_check_branch
    %461 = sbr.rel (0) target = $region25
  $region24: #{_lambda_.2} parent=0 // pred_region
    _
  $region25: #{_lambda_.2} parent=0 // pred_fallthru
    _
  // Predicated region
  $region26: #{_lambda_.2} parent=0 // pred_check
    _
  $region27: #{_lambda_.2} parent=0 // pred_check_branch
    %463 = sbr.rel (0) target = $region29
  $region28: #{_lambda_.2} parent=0 // pred_region
    _
  $region29: #{_lambda_.2} parent=0 // pred_fallthru
    _

// kernel: _lambda_.3
$region0: #{_lambda_.3}
  #allocation0 [shape = 'u32[]', space=smem, size = 0x4, offset = 0x4, fixed_abs, tag = 'smem constant byte address 0x4 - core index']
  #allocation1 [shape = 'u32[144,128]{1,0:T(1,128)}', space=vmem, size = 0x12000, scoped, tag = 'internal scratch']
  #allocation2 [shape = 'f32[2,32]{1,0:T(2,128)}', space=vmem, size = 0x400, scoped, tag = 'scratch operand']
  #allocation3 [shape = 'f32[1,1]{1,0:T(1,128)S(1)}', space=vmem, size = 0x200, scoped, tag = 'scoped memory for _lambda_.3']
  %s0 = inlined_call_operand.vmem [shape: f32[2,16], index: 0, kind: input, shape index: {}]
  %s1 = inlined_call_operand.vmem [shape: f32[2,64], index: 1, kind: input, shape index: {}]
  %s2 = inlined_call_operand.vmem [shape: f32[16,32], index: 2, kind: input, shape index: {}]
  %s3 = inlined_call_operand.vmem [shape: f32[64,32], index: 3, kind: input, shape index: {}]
  %s4 = inlined_call_operand.vmem [shape: f32[1,32], index: 4, kind: input, shape index: {}]
  %s5 = inlined_call_operand.vmem [shape: f32[32,32], index: 5, kind: input, shape index: {}]
  %s6 = inlined_call_operand.vmem [shape: f32[1,32], index: 6, kind: input, shape index: {}]
  %s7 = inlined_call_operand.vmem [shape: f32[32,1], index: 7, kind: input, shape index: {}]
  %s8 = inlined_call_operand.<no memory space> [shape: f32[1,1], index: 8, kind: input, shape index: {}]
  %s9 = inlined_call_operand.vmem [shape: f32[2,1], index: 9, kind: output, shape index: {}]
  %s10 = sld [smem:[#allocation0]]
  $region54: #{_lambda_.3} parent=0
    _
  %s12 = ssub.s32 1, %s10
  %s13 = scalar_select 0, %s12, %s10
  %v14 = vstv %s8
  %15 = vst [vmem:[#allocation3] sm:$0x1] %v14
  // Predicated region
  $region2: #{_lambda_.3} parent=0 // pred_check
    _
  $region3: #{_lambda_.3} parent=0 // pred_check_branch
    %17 = sbr.rel (0) target = $region5
  $region4: #{_lambda_.3} parent=0 // pred_region
    _
  $region5: #{_lambda_.3} parent=0 // pred_fallthru
    _
  // Predicated region
  $region6: #{_lambda_.3} parent=0 // pred_check
    _
  $region7: #{_lambda_.3} parent=0 // pred_check_branch
    %19 = sbr.rel (0) target = $region9
  $region8: #{_lambda_.3} parent=0 // pred_region
    _
  $region9: #{_lambda_.3} parent=0 // pred_fallthru
    _
  // Predicated region
  $region10: #{_lambda_.3} parent=0 // pred_check
    _
  $region11: #{_lambda_.3} parent=0 // pred_check_branch
    %21 = sbr.rel (0) target = $region13
  $region12: #{_lambda_.3} parent=0 // pred_region
    _
  $region13: #{_lambda_.3} parent=0 // pred_fallthru
    _
  // Predicated region
  $region14: #{_lambda_.3} parent=0 // pred_check
    _
  $region15: #{_lambda_.3} parent=0 // pred_check_branch
    %23 = sbr.rel (0) target = $region17
  $region16: #{_lambda_.3} parent=0 // pred_region
    _
  $region17: #{_lambda_.3} parent=0 // pred_fallthru
    _
  // Predicated region
  $region18: #{_lambda_.3} parent=0 // pred_check
    _
  $region19: #{_lambda_.3} parent=0 // pred_check_branch
    %25 = sbr.rel (0) target = $region21
  $region20: #{_lambda_.3} parent=0 // pred_region
    _
  $region21: #{_lambda_.3} parent=0 // pred_fallthru
    _
  // Predicated region
  $region22: #{_lambda_.3} parent=0 // pred_check
    _
  $region23: #{_lambda_.3} parent=0 // pred_check_branch
    %27 = sbr.rel (0) target = $region25
  $region24: #{_lambda_.3} parent=0 // pred_region
    _
  $region25: #{_lambda_.3} parent=0 // pred_fallthru
    _
  // Predicated region
  $region26: #{_lambda_.3} parent=0 // pred_check
    _
  $region27: #{_lambda_.3} parent=0 // pred_check_branch
    %29 = sbr.rel (0) target = $region29
  $region28: #{_lambda_.3} parent=0 // pred_region
    _
  $region29: #{_lambda_.3} parent=0 // pred_fallthru
    _
  // Predicated region
  $region30: #{_lambda_.3} parent=0 // pred_check
    _
  $region31: #{_lambda_.3} parent=0 // pred_check_branch
    %31 = sbr.rel (0) target = $region33
  $region32: #{_lambda_.3} parent=0 // pred_region
    _
  $region33: #{_lambda_.3} parent=0 // pred_fallthru
    _
  // Predicated region
  $region34: #{_lambda_.3} parent=0 // pred_check
    _
  $region35: #{_lambda_.3} parent=0 // pred_check_branch
    %33 = sbr.rel (0) target = $region37
  $region36: #{_lambda_.3} parent=0 // pred_region
    _
  $region37: #{_lambda_.3} parent=0 // pred_fallthru
    _
  %p34 = scmp.eq.s32.totalorder 0, 0
  // Predicated region
  $region38: #{_lambda_.3} parent=0 // pred_check
    %p35 = pneg %p34
  $region39: #{_lambda_.3} parent=0 // pred_check_branch
    %37 = sbr.rel (%p35) target = $region41
  $region40: #{_lambda_.3} parent=0 // pred_region
    %vm38 = vcmask 254976
    %39 = vst.msk [vmem:[#allocation2] sm:$0x3] %vm38, 0.0
  $region41: #{_lambda_.3} parent=0 // pred_fallthru
    _
  %v40 = vld [vmem:[#allocation2] sm:$0x3]
  %v41 = vld [vmem:[%s1] sm:$0x3]
  %v42 = vld [vmem:[%s3] sm:$0xff]
  %v43 = vld [vmem:[%s3 + $0x8] sm:$0xff]
  %v44 = vld [vmem:[%s3 + $0x10] sm:$0xff]
  %v45 = vld [vmem:[%s3 + $0x18] sm:$0xff]
  %v46 = vld [vmem:[%s3 + $0x20] sm:$0xff]
  %v47 = vld [vmem:[%s3 + $0x28] sm:$0xff]
  %v48 = vld [vmem:[%s3 + $0x30] sm:$0xff]
  %v49 = vld [vmem:[%s3 + $0x38] sm:$0xff]
  %vm50 = vcmask 523264
  %v52 = vsel %vm50, %v41, 0
  %54 = vmatprep.subr.mxu0 0.0
  %55 = vmatpush1.msra.mxu0 %v42
  %56 = vmatprep.subr.mxu0 0.0
  %57 = vmatpush1.msra.mxu0 %v43
  %58 = vmatprep.subr.mxu0 0.0
  %59 = vmatpush1.msra.mxu0 %v44
  %60 = vmatprep.subr.mxu0 0.0
  %61 = vmatpush1.msra.mxu0 %v45
  %62 = vmatprep.subr.mxu0 0.0
  %63 = vmatpush1.msra.mxu0 %v46
  %64 = vmatprep.subr.mxu0 0.0
  %65 = vmatpush1.msra.mxu0 %v47
  %66 = vmatprep.subr.mxu0 0.0
  %67 = vmatpush1.msra.mxu0 %v48
  %68 = vmatprep.subr.mxu0 0.0
  %69 = vmatpush1.msra.mxu0 %v49
  %70 = vmatprep.subr.mxu0 0.0
  %71 = vmatpush1.msra.mxu0 0.0
  %72 = vmatprep.subr.mxu0 0.0
  %73 = vmatpush1.msra.mxu0 0.0
  %74 = vmatprep.subr.mxu0 0.0
  %75 = vmatpush1.msra.mxu0 0.0
  %76 = vmatprep.subr.mxu0 0.0
  %77 = vmatpush1.msra.mxu0 0.0
  %78 = vmatprep.subr.mxu0 0.0
  %79 = vmatpush1.msra.mxu0 0.0
  %80 = vmatprep.subr.mxu0 0.0
  %81 = vmatpush1.msra.mxu0 0.0
  %82 = vmatprep.subr.mxu0 0.0
  %83 = vmatpush1.msra.mxu0 0.0
  %84 = vmatprep.subr.mxu0 0.0
  %85 = vmatpush1.msra.mxu0 0.0
  %86 = vmatprep.subr.mxu0 0.0
  %87 = vmatpush1.msra.mxu0 0.0
  %88 = vmatprep.subr.mxu0 0.0
  %89 = vmatpush1.msra.mxu0 0.0
  %90 = vmatprep.subr.mxu0 0.0
  %91 = vmatpush1.msra.mxu0 0.0
  %92 = vmatprep.subr.mxu0 0.0
  %93 = vmatpush1.msra.mxu0 0.0
  %94 = vmatprep.subr.mxu0 0.0
  %95 = vmatpush1.msra.mxu0 0.0
  %96 = vmatprep.subr.mxu0 0.0
  %97 = vmatpush1.msra.mxu0 0.0
  %98 = vmatprep.subr.mxu0 0.0
  %99 = vmatpush1.msra.mxu0 0.0
  %100 = vmatprep.subr.mxu0 0.0
  %101 = vmatpush1.msra.mxu0 0.0
  %102 = vmatprep.subr.mxu0 0.0
  %103 = vmatpush1.msra.mxu0 0.0
  %104 = vmatprep.subr.mxu0 0.0
  %105 = vmatpush1.msra.mxu0 0.0
  %106 = vmatprep.subr.mxu0 0.0
  %107 = vmatpush1.msra.mxu0 0.0
  %108 = vmatprep.subr.mxu0 0.0
  %109 = vmatpush1.msra.mxu0 0.0
  %110 = vmatprep.subr.mxu0 0.0
  %111 = vmatpush1.msra.mxu0 0.0
  %112 = vmatprep.subr.mxu0 0.0
  %113 = vmatpush1.msra.mxu0 0.0
  %114 = vmatprep.subr.mxu0 0.0
  %115 = vmatpush1.msra.mxu0 0.0
  %116 = vmatprep.subr.mxu0 0.0
  %117 = vmatpush1.msra.mxu0 0.0
  %118 = vmatprep.mubr.f32.mxu0 0.0
  %119 = vmatmul.mubr.f32.gmra.mrb[0].mxu0 %v52
  %v120 = vpop.f32.mrb[0].mxu0
  %v121 = vadd.f32 0.0, %v120
  %v122 = vpop.f32.mrb[0].mxu0
  %123 = vdwg.mxu0
  %v124 = vadd.f32 %v40, %v121
  %vm125 = vcmask 254976
  %126 = vst.msk [vmem:[#allocation2] sm:$0x3] %vm125, %v124
  // Predicated region
  $region42: #{_lambda_.3} parent=0 // pred_check
    %p127 = pneg %p34
  $region43: #{_lambda_.3} parent=0 // pred_check_branch
    %129 = sbr.rel (%p127) target = $region45
  $region44: #{_lambda_.3} parent=0 // pred_region
    %v130 = vld [vmem:[#allocation2] sm:$0x3]
    %v131 = vld [vmem:[%s0] sm:$0x3]
    %v132 = vld [vmem:[%s2] sm:$0xff]
    %v133 = vld [vmem:[%s2 + $0x8] sm:$0xff]
    %vm134 = vcmask 130048
    %v136 = vsel %vm134, %v131, 0
    %138 = vmatprep.subr.mxu0 0.0
    %139 = vmatpush1.msra.mxu0 %v132
    %140 = vmatprep.subr.mxu0 0.0
    %141 = vmatpush1.msra.mxu0 %v133
    %142 = vmatprep.subr.mxu0 0.0
    %143 = vmatpush1.msra.mxu0 0.0
    %144 = vmatprep.subr.mxu0 0.0
    %145 = vmatpush1.msra.mxu0 0.0
    %146 = vmatprep.subr.mxu0 0.0
    %147 = vmatpush1.msra.mxu0 0.0
    %148 = vmatprep.subr.mxu0 0.0
    %149 = vmatpush1.msra.mxu0 0.0
    %150 = vmatprep.subr.mxu0 0.0
    %151 = vmatpush1.msra.mxu0 0.0
    %152 = vmatprep.subr.mxu0 0.0
    %153 = vmatpush1.msra.mxu0 0.0
    %154 = vmatprep.subr.mxu0 0.0
    %155 = vmatpush1.msra.mxu0 0.0
    %156 = vmatprep.subr.mxu0 0.0
    %157 = vmatpush1.msra.mxu0 0.0
    %158 = vmatprep.subr.mxu0 0.0
    %159 = vmatpush1.msra.mxu0 0.0
    %160 = vmatprep.subr.mxu0 0.0
    %161 = vmatpush1.msra.mxu0 0.0
    %162 = vmatprep.subr.mxu0 0.0
    %163 = vmatpush1.msra.mxu0 0.0
    %164 = vmatprep.subr.mxu0 0.0
    %165 = vmatpush1.msra.mxu0 0.0
    %166 = vmatprep.subr.mxu0 0.0
    %167 = vmatpush1.msra.mxu0 0.0
    %168 = vmatprep.subr.mxu0 0.0
    %169 = vmatpush1.msra.mxu0 0.0
    %170 = vmatprep.subr.mxu0 0.0
    %171 = vmatpush1.msra.mxu0 0.0
    %172 = vmatprep.subr.mxu0 0.0
    %173 = vmatpush1.msra.mxu0 0.0
    %174 = vmatprep.subr.mxu0 0.0
    %175 = vmatpush1.msra.mxu0 0.0
    %176 = vmatprep.subr.mxu0 0.0
    %177 = vmatpush1.msra.mxu0 0.0
    %178 = vmatprep.subr.mxu0 0.0
    %179 = vmatpush1.msra.mxu0 0.0
    %180 = vmatprep.subr.mxu0 0.0
    %181 = vmatpush1.msra.mxu0 0.0
    %182 = vmatprep.subr.mxu0 0.0
    %183 = vmatpush1.msra.mxu0 0.0
    %184 = vmatprep.subr.mxu0 0.0
    %185 = vmatpush1.msra.mxu0 0.0
    %186 = vmatprep.subr.mxu0 0.0
    %187 = vmatpush1.msra.mxu0 0.0
    %188 = vmatprep.subr.mxu0 0.0
    %189 = vmatpush1.msra.mxu0 0.0
    %190 = vmatprep.subr.mxu0 0.0
    %191 = vmatpush1.msra.mxu0 0.0
    %192 = vmatprep.subr.mxu0 0.0
    %193 = vmatpush1.msra.mxu0 0.0
    %194 = vmatprep.subr.mxu0 0.0
    %195 = vmatpush1.msra.mxu0 0.0
    %196 = vmatprep.subr.mxu0 0.0
    %197 = vmatpush1.msra.mxu0 0.0
    %198 = vmatprep.subr.mxu0 0.0
    %199 = vmatpush1.msra.mxu0 0.0
    %200 = vmatprep.subr.mxu0 0.0
    %201 = vmatpush1.msra.mxu0 0.0
    %202 = vmatprep.mubr.f32.mxu0 0.0
    %203 = vmatmul.mubr.f32.gmra.mrb[0].mxu0 %v136
    %v204 = vpop.f32.mrb[0].mxu0
    %v205 = vadd.f32 0.0, %v204
    %v206 = vpop.f32.mrb[0].mxu0
    %207 = vdwg.mxu0
    %v208 = vadd.f32 %v130, %v205
    %v209 = vld [vmem:[%s4] sm:$0x1]
    %v211 = vlaneseq
    %v212 = vshrl.u32 %v211, 7
    %v213 = vsub.s32 0, %v212
    %v214 = vrot.slane %v209, %v213
    %v216 = vadd.f32 %v208, %v214
    %v217 = vmax.f32 %v216, 0.0
    %v218 = vld [vmem:[%s5] sm:$0xff]
    %v219 = vld [vmem:[%s5 + $0x8] sm:$0xff]
    %v220 = vld [vmem:[%s5 + $0x10] sm:$0xff]
    %v221 = vld [vmem:[%s5 + $0x18] sm:$0xff]
    %v222 = vld [vmem:[%s6] sm:$0x1]
    %v224 = vlaneseq
    %v225 = vshrl.u32 %v224, 7
    %v226 = vsub.s32 0, %v225
    %v227 = vrot.slane %v222, %v226
    %vm229 = vcmask 261120
    %v231 = vsel %vm229, %v217, 0
    %233 = vmatprep.subr.mxu0 0.0
    %234 = vmatpush1.msra.mxu0 %v218
    %235 = vmatprep.subr.mxu0 0.0
    %236 = vmatpush1.msra.mxu0 %v219
    %237 = vmatprep.subr.mxu0 0.0
    %238 = vmatpush1.msra.mxu0 %v220
    %239 = vmatprep.subr.mxu0 0.0
    %240 = vmatpush1.msra.mxu0 %v221
    %241 = vmatprep.subr.mxu0 0.0
    %242 = vmatpush1.msra.mxu0 0.0
    %243 = vmatprep.subr.mxu0 0.0
    %244 = vmatpush1.msra.mxu0 0.0
    %245 = vmatprep.subr.mxu0 0.0
    %246 = vmatpush1.msra.mxu0 0.0
    %247 = vmatprep.subr.mxu0 0.0
    %248 = vmatpush1.msra.mxu0 0.0
    %249 = vmatprep.subr.mxu0 0.0
    %250 = vmatpush1.msra.mxu0 0.0
    %251 = vmatprep.subr.mxu0 0.0
    %252 = vmatpush1.msra.mxu0 0.0
    %253 = vmatprep.subr.mxu0 0.0
    %254 = vmatpush1.msra.mxu0 0.0
    %255 = vmatprep.subr.mxu0 0.0
    %256 = vmatpush1.msra.mxu0 0.0
    %257 = vmatprep.subr.mxu0 0.0
    %258 = vmatpush1.msra.mxu0 0.0
    %259 = vmatprep.subr.mxu0 0.0
    %260 = vmatpush1.msra.mxu0 0.0
    %261 = vmatprep.subr.mxu0 0.0
    %262 = vmatpush1.msra.mxu0 0.0
    %263 = vmatprep.subr.mxu0 0.0
    %264 = vmatpush1.msra.mxu0 0.0
    %265 = vmatprep.subr.mxu0 0.0
    %266 = vmatpush1.msra.mxu0 0.0
    %267 = vmatprep.subr.mxu0 0.0
    %268 = vmatpush1.msra.mxu0 0.0
    %269 = vmatprep.subr.mxu0 0.0
    %270 = vmatpush1.msra.mxu0 0.0
    %271 = vmatprep.subr.mxu0 0.0
    %272 = vmatpush1.msra.mxu0 0.0
    %273 = vmatprep.subr.mxu0 0.0
    %274 = vmatpush1.msra.mxu0 0.0
    %275 = vmatprep.subr.mxu0 0.0
    %276 = vmatpush1.msra.mxu0 0.0
    %277 = vmatprep.subr.mxu0 0.0
    %278 = vmatpush1.msra.mxu0 0.0
    %279 = vmatprep.subr.mxu0 0.0
    %280 = vmatpush1.msra.mxu0 0.0
    %281 = vmatprep.subr.mxu0 0.0
    %282 = vmatpush1.msra.mxu0 0.0
    %283 = vmatprep.subr.mxu0 0.0
    %284 = vmatpush1.msra.mxu0 0.0
    %285 = vmatprep.subr.mxu0 0.0
    %286 = vmatpush1.msra.mxu0 0.0
    %287 = vmatprep.subr.mxu0 0.0
    %288 = vmatpush1.msra.mxu0 0.0
    %289 = vmatprep.subr.mxu0 0.0
    %290 = vmatpush1.msra.mxu0 0.0
    %291 = vmatprep.subr.mxu0 0.0
    %292 = vmatpush1.msra.mxu0 0.0
    %293 = vmatprep.subr.mxu0 0.0
    %294 = vmatpush1.msra.mxu0 0.0
    %295 = vmatprep.subr.mxu0 0.0
    %296 = vmatpush1.msra.mxu0 0.0
    %297 = vmatprep.mubr.f32.mxu0 0.0
    %298 = vmatmul.mubr.f32.gmra.mrb[0].mxu0 %v231
    %v299 = vpop.f32.mrb[0].mxu0
    %v300 = vadd.f32 %v227, %v299
    %v301 = vpop.f32.mrb[0].mxu0
    %302 = vdwg.mxu0
    %v303 = vmax.f32 %v300, 0.0
    %v304 = vld [vmem:[%s7] sm:$0xff]
    %v305 = vld [vmem:[%s7 + $0x8] sm:$0xff]
    %v306 = vld [vmem:[%s7 + $0x10] sm:$0xff]
    %v307 = vld [vmem:[%s7 + $0x18] sm:$0xff]
    %v308 = vld [vmem:[#allocation3] sm:$0x1]
    %v310 = vlaneseq
    %v311 = vshrl.u32 %v310, 7
    %v312 = vsub.s32 0, %v311
    %v313 = vrot.slane %v308, %v312
    %v316 = vsel %vm229, %v303, 0
    %318 = vmatprep.subr.mxu0 0.0
    %319 = vmatpush1.msra.mxu0 %v304
    %320 = vmatprep.subr.mxu0 0.0
    %321 = vmatpush1.msra.mxu0 %v305
    %322 = vmatprep.subr.mxu0 0.0
    %323 = vmatpush1.msra.mxu0 %v306
    %324 = vmatprep.subr.mxu0 0.0
    %325 = vmatpush1.msra.mxu0 %v307
    %326 = vmatprep.subr.mxu0 0.0
    %327 = vmatpush1.msra.mxu0 0.0
    %328 = vmatprep.subr.mxu0 0.0
    %329 = vmatpush1.msra.mxu0 0.0
    %330 = vmatprep.subr.mxu0 0.0
    %331 = vmatpush1.msra.mxu0 0.0
    %332 = vmatprep.subr.mxu0 0.0
    %333 = vmatpush1.msra.mxu0 0.0
    %334 = vmatprep.subr.mxu0 0.0
    %335 = vmatpush1.msra.mxu0 0.0
    %336 = vmatprep.subr.mxu0 0.0
    %337 = vmatpush1.msra.mxu0 0.0
    %338 = vmatprep.subr.mxu0 0.0
    %339 = vmatpush1.msra.mxu0 0.0
    %340 = vmatprep.subr.mxu0 0.0
    %341 = vmatpush1.msra.mxu0 0.0
    %342 = vmatprep.subr.mxu0 0.0
    %343 = vmatpush1.msra.mxu0 0.0
    %344 = vmatprep.subr.mxu0 0.0
    %345 = vmatpush1.msra.mxu0 0.0
    %346 = vmatprep.subr.mxu0 0.0
    %347 = vmatpush1.msra.mxu0 0.0
    %348 = vmatprep.subr.mxu0 0.0
    %349 = vmatpush1.msra.mxu0 0.0
    %350 = vmatprep.subr.mxu0 0.0
    %351 = vmatpush1.msra.mxu0 0.0
    %352 = vmatprep.subr.mxu0 0.0
    %353 = vmatpush1.msra.mxu0 0.0
    %354 = vmatprep.subr.mxu0 0.0
    %355 = vmatpush1.msra.mxu0 0.0
    %356 = vmatprep.subr.mxu0 0.0
    %357 = vmatpush1.msra.mxu0 0.0
    %358 = vmatprep.subr.mxu0 0.0
    %359 = vmatpush1.msra.mxu0 0.0
    %360 = vmatprep.subr.mxu0 0.0
    %361 = vmatpush1.msra.mxu0 0.0
    %362 = vmatprep.subr.mxu0 0.0
    %363 = vmatpush1.msra.mxu0 0.0
    %364 = vmatprep.subr.mxu0 0.0
    %365 = vmatpush1.msra.mxu0 0.0
    %366 = vmatprep.subr.mxu0 0.0
    %367 = vmatpush1.msra.mxu0 0.0
    %368 = vmatprep.subr.mxu0 0.0
    %369 = vmatpush1.msra.mxu0 0.0
    %370 = vmatprep.subr.mxu0 0.0
    %371 = vmatpush1.msra.mxu0 0.0
    %372 = vmatprep.subr.mxu0 0.0
    %373 = vmatpush1.msra.mxu0 0.0
    %374 = vmatprep.subr.mxu0 0.0
    %375 = vmatpush1.msra.mxu0 0.0
    %376 = vmatprep.subr.mxu0 0.0
    %377 = vmatpush1.msra.mxu0 0.0
    %378 = vmatprep.subr.mxu0 0.0
    %379 = vmatpush1.msra.mxu0 0.0
    %380 = vmatprep.subr.mxu0 0.0
    %381 = vmatpush1.msra.mxu0 0.0
    %382 = vmatprep.mubr.f32.mxu0 0.0
    %383 = vmatmul.mubr.f32.gmra.mrb[0].mxu0 %v316
    %v384 = vpop.f32.mrb[0].mxu0
    %v385 = vadd.f32 %v313, %v384
    %v386 = vpop.f32.mrb[0].mxu0
    %387 = vdwg.mxu0
    %vm388 = vcmask 1024
    %389 = vst.msk [vmem:[%s9] sm:$0x3] %vm388, %v385
  $region45: #{_lambda_.3} parent=0 // pred_fallthru
    _
  // Predicated region
  $region46: #{_lambda_.3} parent=0 // pred_check
    _
  $region47: #{_lambda_.3} parent=0 // pred_check_branch
    %391 = sbr.rel (0) target = $region49
  $region48: #{_lambda_.3} parent=0 // pred_region
    _
  $region49: #{_lambda_.3} parent=0 // pred_fallthru
    _
  // Predicated region
  $region50: #{_lambda_.3} parent=0 // pred_check
    _
  $region51: #{_lambda_.3} parent=0 // pred_check_branch
    %393 = sbr.rel (0) target = $region53
  $region52: #{_lambda_.3} parent=0 // pred_region
    _
  $region53: #{_lambda_.3} parent=0 // pred_fallthru
    _

</llo_original>
